<compile_context>
chip_gen: v7x
topology: tpu7x:2x2x1
jax: 0.10.0
libtpu: 0.0.40
codegen_flags: <defaults>
</compile_context>

<pallas_src>
import functools
import math

import jax
import jax.numpy as jnp
from jax import lax
from jax.experimental import pallas as pl
from jax.experimental.pallas import tpu as pltpu


def _round_up(x, m):
    return (x + m - 1) // m * m


# ---------------------------------------------------------------------------
# Kernel 1: fused QKV projection  (one wide MXU pass instead of 3 skinny ones)
# ---------------------------------------------------------------------------
def _qkv_proj_kernel(x_ref, w_ref, q_ref, k_ref, v_ref, *, dk_p):
    x = x_ref[...]                                              # (rt, di_p) bf16
    qkv = jnp.dot(x, w_ref[...], preferred_element_type=jnp.float32)
    # Slices land on 128-lane boundaries by construction.
    q_ref[...] = qkv[:, :dk_p].astype(q_ref.dtype)              # already scaled
    k_ref[...] = qkv[:, dk_p:2 * dk_p].astype(k_ref.dtype)
    v_ref[...] = qkv[:, 2 * dk_p:].astype(v_ref.dtype)


# ---------------------------------------------------------------------------
# Kernel 2: flash attention with online softmax
# ---------------------------------------------------------------------------
def _flash_attn_kernel(q_ref, k_ref, v_ref, o_ref, m_sc, l_sc, acc_sc,
                       *, n_valid, tile_kv, need_mask):
    kv = pl.program_id(1)

    @pl.when(kv == 0)
    def _():
        m_sc[...] = jnp.full_like(m_sc, -jnp.inf)
        l_sc[...] = jnp.zeros_like(l_sc)
        acc_sc[...] = jnp.zeros_like(acc_sc)

    q = q_ref[...]                                              # (tq, dk_p) bf16
    k = k_ref[...]                                              # (tk, dk_p) bf16
    # scores = q @ k.T without an explicit transpose (contract feature axes).
    s = lax.dot_general(q, k, (((1,), (1,)), ((), ())),
                        preferred_element_type=jnp.float32)     # (tq, tk) f32

    if need_mask:  # static: only emitted when n was padded up to a tile multiple
        col = kv * tile_kv + lax.broadcasted_iota(jnp.int32, s.shape, 1)
        s = jnp.where(col < n_valid, s, jnp.float32(-1e30))

    m_prev = m_sc[...]
    m_new = jnp.maximum(m_prev, jnp.max(s, axis=-1, keepdims=True))
    alpha = jnp.exp(m_prev - m_new)
    p = jnp.exp(s - m_new)
    l_sc[...] = alpha * l_sc[...] + jnp.sum(p, axis=-1, keepdims=True)
    acc_sc[...] = alpha * acc_sc[...] + jnp.dot(
        p.astype(v_ref.dtype), v_ref[...], preferred_element_type=jnp.float32)
    m_sc[...] = m_new

    @pl.when(kv == pl.num_programs(1) - 1)
    def _():
        inv_l = pl.reciprocal(l_sc[...], approx=True)           # EUP slot
        o_ref[...] = (acc_sc[...] * inv_l).astype(o_ref.dtype)


# ---------------------------------------------------------------------------
# Wrapper
# ---------------------------------------------------------------------------
def self_attention(x, w_q, w_k, w_v, *, tile_q=128, tile_kv=128):
    """Pallas SelfAttention forward.

    x:   (n, dim_in)  float32
    w_q: (dim_k, dim_in)   (PyTorch nn.Linear weight layout, bias=False)
    w_k: (dim_k, dim_in)
    w_v: (dim_v, dim_in)
    returns: (n, dim_v)
    """
    n, dim_in = x.shape
    dim_k = w_q.shape[0]
    dim_v = w_v.shape[0]
    norm = 1.0 / math.sqrt(dim_k)

    # Lane-aligned padded sizes.
    di_p = _round_up(dim_in, 128)
    dk_p = _round_up(dim_k, 128)
    dv_p = _round_up(dim_v, 128)
    n_p = _round_up(n, math.lcm(tile_q, tile_kv))

    f32, bf16 = jnp.float32, jnp.bfloat16

    # Fused, padded QKV weight: [ W_q^T * norm | W_k^T | W_v^T ], each segment
    # padded out to a multiple of 128 lanes.  Scale folded into Q (O(n*dk)
    # instead of O(n^2) work).
    w_fused = jnp.zeros((di_p, 2 * dk_p + dv_p), f32)
    w_fused = w_fused.at[:dim_in, :dim_k].set(w_q.T.astype(f32) * norm)
    w_fused = w_fused.at[:dim_in, dk_p:dk_p + dim_k].set(w_k.T.astype(f32))
    w_fused = w_fused.at[:dim_in, 2 * dk_p:2 * dk_p + dim_v].set(w_v.T.astype(f32))
    w_fused = w_fused.astype(bf16)

    x_p = jnp.zeros((n_p, di_p), bf16)
    x_p = x_p.at[:n, :dim_in].set(x.astype(bf16))

    # ---- Kernel 1: QKV projection, tiled over rows -------------------------
    n_row_tiles = n_p // tile_q
    q_p, k_p, v_p = pl.pallas_call(
        functools.partial(_qkv_proj_kernel, dk_p=dk_p),
        out_shape=(
            jax.ShapeDtypeStruct((n_p, dk_p), bf16),
            jax.ShapeDtypeStruct((n_p, dk_p), bf16),
            jax.ShapeDtypeStruct((n_p, dv_p), bf16),
        ),
        grid_spec=pltpu.PrefetchScalarGridSpec(
            num_scalar_prefetch=0,
            grid=(n_row_tiles,),
            in_specs=[
                pl.BlockSpec((tile_q, di_p), lambda i: (i, 0)),
                pl.BlockSpec((di_p, 2 * dk_p + dv_p), lambda i: (0, 0)),
            ],
            out_specs=(
                pl.BlockSpec((tile_q, dk_p), lambda i: (i, 0)),
                pl.BlockSpec((tile_q, dk_p), lambda i: (i, 0)),
                pl.BlockSpec((tile_q, dv_p), lambda i: (i, 0)),
            ),
        ),
        compiler_params=pltpu.CompilerParams(
            dimension_semantics=("parallel",)),
    )(x_p, w_fused)

    # ---- Kernel 2: flash attention ------------------------------------------
    n_q_tiles = n_p // tile_q
    n_kv_tiles = n_p // tile_kv
    need_mask = (n_p != n)

    cost = pl.CostEstimate(
        flops=2 * n_p * n_p * (dk_p + dv_p),
        transcendentals=n_p * n_p,
        bytes_accessed=(q_p.size + k_p.size + v_p.size) * 2 + n_p * dv_p * 4,
    )

    out_p = pl.pallas_call(
        functools.partial(_flash_attn_kernel,
                          n_valid=n, tile_kv=tile_kv, need_mask=need_mask),
        out_shape=jax.ShapeDtypeStruct((n_p, dv_p), f32),
        grid_spec=pltpu.PrefetchScalarGridSpec(
            num_scalar_prefetch=0,
            grid=(n_q_tiles, n_kv_tiles),
            in_specs=[
                pl.BlockSpec((tile_q, dk_p), lambda i, j: (i, 0)),
                pl.BlockSpec((tile_kv, dk_p), lambda i, j: (j, 0)),
                pl.BlockSpec((tile_kv, dv_p), lambda i, j: (j, 0)),
            ],
            out_specs=pl.BlockSpec((tile_q, dv_p), lambda i, j: (i, 0)),
            scratch_shapes=[
                pltpu.VMEM((tile_q, 1), f32),      # running max m
                pltpu.VMEM((tile_q, 1), f32),      # running sum l
                pltpu.VMEM((tile_q, dv_p), f32),   # un-normalized accumulator
            ],
        ),
        compiler_params=pltpu.CompilerParams(
            dimension_semantics=("parallel", "arbitrary")),
        cost_estimate=cost,
    )(q_p, k_p, v_p)

    return out_p[:n, :dim_v].astype(x.dtype)


def _reference(x, w_q, w_k, w_v):
    dim_k = w_q.shape[0]
    q = x @ w_q.T
    k = x @ w_k.T
    v = x @ w_v.T
    dist = jax.nn.softmax((q @ k.T) / math.sqrt(dim_k), axis=-1)
    return dist @ v


if __name__ == "__main__":
    # Deterministic synthetic parameters / inputs (no checkpoint loading).
    # Sizes deliberately exercise row padding (250 -> 256), feature padding
    # (96/40/72 -> 128) and a multi-tile (2 x 2) flash grid.
    n, dim_in, dim_k, dim_v = 250, 96, 40, 72
    key = jax.random.PRNGKey(0)
    kx, kq, kk, kv = jax.random.split(key, 4)

    x = jax.random.normal(kx, (n, dim_in), dtype=jnp.float32)
    # nn.Linear default init: U(-1/sqrt(fan_in), 1/sqrt(fan_in))
    bound = 1.0 / math.sqrt(dim_in)
    w_q = jax.random.uniform(kq, (dim_k, dim_in), jnp.float32, -bound, bound)
    w_k = jax.random.uniform(kk, (dim_k, dim_in), jnp.float32, -bound, bound)
    w_v = jax.random.uniform(kv, (dim_v, dim_in), jnp.float32, -bound, bound)

    out = self_attention(x, w_q, w_k, w_v)
    out = jax.block_until_ready(out)

    ref = _reference(x, w_q, w_k, w_v)
    assert out.shape == (n, dim_v)
    # bf16 MXU matmuls + approx softmax reciprocal => relaxed tolerance vs f32 ref.
    assert jnp.allclose(out, ref, atol=5e-2, rtol=5e-2), float(
        jnp.max(jnp.abs(out - ref)))
    print("KERNEL_OK")
</pallas_src>

<mosaic_0001>
module attributes {stable_mosaic.version = 11 : i64} {
  func.func @_qkv_proj_kernel(%arg0: i32, %arg1: memref<128x128xbf16, #tpu.memory_space<vmem>>, %arg2: memref<128x384xbf16, #tpu.memory_space<vmem>>, %arg3: memref<128x128xbf16, #tpu.memory_space<vmem>>, %arg4: memref<128x128xbf16, #tpu.memory_space<vmem>>, %arg5: memref<128x128xbf16, #tpu.memory_space<vmem>>) attributes {dimension_semantics = [#tpu.dimension_semantics<parallel>], iteration_bounds = array<i64: 2>, scalar_prefetch = 0 : i64, scratch_operands = 0 : i64, tpu.core_type = #tpu.core_type<tc>, window_params = [{transform_indices = @transform_0, window_bounds = array<i64: 128, 128>}, {pipeline_mode = #tpu.pipeline_mode<synchronous>, transform_indices = @transform_1, window_bounds = array<i64: 128, 384>}, {transform_indices = @transform_2, window_bounds = array<i64: 128, 128>}, {transform_indices = @transform_3, window_bounds = array<i64: 128, 128>}, {transform_indices = @transform_4, window_bounds = array<i64: 128, 128>}]} {
    %c0 = arith.constant 0 : index
    %c0_0 = arith.constant 0 : index
    %0 = vector.load %arg1[%c0, %c0_0] : memref<128x128xbf16, #tpu.memory_space<vmem>>, vector<128x128xbf16>
    %c0_1 = arith.constant 0 : index
    %c0_2 = arith.constant 0 : index
    %1 = vector.load %arg2[%c0_1, %c0_2] : memref<128x384xbf16, #tpu.memory_space<vmem>>, vector<128x384xbf16>
    %cst = arith.constant dense<0.000000e+00> : vector<128x384xf32>
    %2 = tpu.matmul %0, %1, %cst {dimension_numbers = #tpu.dot_dimension_numbers<[1], [0], [0], [1], [0, 0, 1, 1], [], []>} : vector<128x128xbf16>, vector<128x384xbf16>, vector<128x384xf32> -> vector<128x384xf32>
    %3 = vector.extract_strided_slice %2 {offsets = [0, 0], sizes = [128, 128], strides = [1, 1]} : vector<128x384xf32> to vector<128x128xf32>
    %4 = arith.truncf %3 : vector<128x128xf32> to vector<128x128xbf16>
    %c0_3 = arith.constant 0 : index
    %c0_4 = arith.constant 0 : index
    %5 = vector.load %arg3[%c0_3, %c0_4] : memref<128x128xbf16, #tpu.memory_space<vmem>>, vector<128x128xbf16>
    tpu.vector_store %arg3[%c0_3, %c0_4], %4 {strides = array<i32>} : memref<128x128xbf16, #tpu.memory_space<vmem>>, vector<128x128xbf16>,
    %6 = vector.extract_strided_slice %2 {offsets = [0, 128], sizes = [128, 128], strides = [1, 1]} : vector<128x384xf32> to vector<128x128xf32>
    %7 = arith.truncf %6 : vector<128x128xf32> to vector<128x128xbf16>
    %c0_5 = arith.constant 0 : index
    %c0_6 = arith.constant 0 : index
    %8 = vector.load %arg4[%c0_5, %c0_6] : memref<128x128xbf16, #tpu.memory_space<vmem>>, vector<128x128xbf16>
    tpu.vector_store %arg4[%c0_5, %c0_6], %7 {strides = array<i32>} : memref<128x128xbf16, #tpu.memory_space<vmem>>, vector<128x128xbf16>,
    %9 = vector.extract_strided_slice %2 {offsets = [0, 256], sizes = [128, 128], strides = [1, 1]} : vector<128x384xf32> to vector<128x128xf32>
    %10 = arith.truncf %9 : vector<128x128xf32> to vector<128x128xbf16>
    %c0_7 = arith.constant 0 : index
    %c0_8 = arith.constant 0 : index
    %11 = vector.load %arg5[%c0_7, %c0_8] : memref<128x128xbf16, #tpu.memory_space<vmem>>, vector<128x128xbf16>
    tpu.vector_store %arg5[%c0_7, %c0_8], %10 {strides = array<i32>} : memref<128x128xbf16, #tpu.memory_space<vmem>>, vector<128x128xbf16>,
    return
  }
  func.func @transform_0(%arg0: i32) -> (i32, i32) {
    %c0_i32 = arith.constant 0 : i32
    %c0_i32_0 = arith.constant 0 : i32
    return %arg0, %c0_i32 : i32, i32
  }
  func.func @transform_1(%arg0: i32) -> (i32, i32) {
    %c0_i32 = arith.constant 0 : i32
    %c0_i32_0 = arith.constant 0 : i32
    %c0_i32_1 = arith.constant 0 : i32
    return %c0_i32, %c0_i32_0 : i32, i32
  }
  func.func @transform_2(%arg0: i32) -> (i32, i32) {
    %c0_i32 = arith.constant 0 : i32
    %c0_i32_0 = arith.constant 0 : i32
    return %arg0, %c0_i32 : i32, i32
  }
  func.func @transform_3(%arg0: i32) -> (i32, i32) {
    %c0_i32 = arith.constant 0 : i32
    %c0_i32_0 = arith.constant 0 : i32
    return %arg0, %c0_i32 : i32, i32
  }
  func.func @transform_4(%arg0: i32) -> (i32, i32) {
    %c0_i32 = arith.constant 0 : i32
    %c0_i32_0 = arith.constant 0 : i32
    return %arg0, %c0_i32 : i32, i32
  }
}

</mosaic_0001>

<llo_original>
// kernel: tpu_custom_call.1
$region0: #{tpu_custom_call.1}
  #allocation0 [shape = 'u32[]', space=smem, size = 0x4, offset = 0x4, fixed_abs, tag = 'smem constant byte address 0x4 - core index']
  #allocation1 [shape = 'u32[144,128]{1,0:T(1,128)}', space=vmem, size = 0x12000, scoped, tag = 'internal scratch']
  %s0 = inlined_call_operand.hbm [shape: bf16[256,128], index: 0, kind: input, shape index: {}]
  %s1 = inlined_call_operand.hbm [shape: bf16[128,384], index: 1, kind: input, shape index: {}]
  %s2 = inlined_call_operand.hbm [shape: bf16[256,128], index: 2, kind: output, shape index: {0}]
  %s3 = inlined_call_operand.hbm [shape: bf16[256,128], index: 3, kind: output, shape index: {1}]
  %s4 = inlined_call_operand.hbm [shape: bf16[256,128], index: 4, kind: output, shape index: {2}]
  %5 = xla_tuple %s2, %s3, %s4
  %s6 = sld [smem:[#allocation0]]
  $region65: #{tpu_custom_call.1} parent=0
    _
  %s8 = ssub.s32 1, %s6
  %s9 = scalar_select 0, %s8, %s6
  $region1: #{tpu_custom_call.1} parent=0
    #allocation2 [shape = 'u8[65536]{0}', space=vmem, size = 0x10000, scoped, tag = 'input window, operand 0']
    #allocation3 [shape = 's32[2]{0}', space=sflag, size = 0x8, scoped, tag = 'scoped memory for tpu_custom_call.1']
    #allocation4 [shape = 's32[2]{0}', space=sflag, size = 0x8, scoped, tag = 'scoped memory for tpu_custom_call.1']
    #allocation5 [shape = 'u8[98304]{0}', space=vmem, size = 0x18000, scoped, tag = 'input window, operand 1, single buffered']
    #allocation6 [shape = 's32[1]{0}', space=sflag, size = 0x4, scoped, tag = 'scoped memory for tpu_custom_call.1']
    #allocation7 [shape = 'u8[65536]{0}', space=vmem, size = 0x10000, scoped, tag = 'output window, operand 0']
    #allocation8 [shape = 'u8[65536]{0}', space=vmem, size = 0x10000, scoped, tag = 'output window, operand 1']
    #allocation9 [shape = 's32[2]{0}', space=sflag, size = 0x8, scoped, tag = 'scoped memory for tpu_custom_call.1']
    #allocation10 [shape = 'u8[65536]{0}', space=vmem, size = 0x10000, scoped, tag = 'output window, operand 2']
    %10 = vsyncpa [#allocation3], 0
    %s11 = scalar_lea.sflag [#allocation3], 1
    %12 = vsyncpa %s11, 0
    %13 = vsyncpa [#allocation6], 0
    %14 = vsyncpa [#allocation4], 0
    %s15 = scalar_lea.sflag [#allocation4], 1
    %16 = vsyncpa %s15, 0
    %17 = vsyncpa [#allocation9], 0
    %s18 = scalar_lea.sflag [#allocation9], 1
    %19 = vsyncpa %s18, 0
    loop: start=0, step=1, limit=4
    $region2: #{tpu_custom_call.1} parent=1 // loop_pre_header
      _
    $region3: #{tpu_custom_call.1} parent=1 // loop_header
      %s21 = sphi 0, %s25
      %p22 = scmp.ge.s32.totalorder %s21, 4
      %s31 = sphi 0, %s33
      %s34 = sphi 0, %s31
      %s35 = sphi 0, %s34
      %s51 = sphi 0, %s35
      %s55 = sphi 0, %s55
      %s57 = sphi 0, %s55
      %s58 = sphi 0, %s57
      %s72 = sphi 0, %s58
      %s78 = sphi 0, %s80
      %s81 = sphi 0, %s78
      %s82 = sphi 0, %s81
      %s98 = sphi 0, %s82
      %s104 = sphi 0, %s106
      %s107 = sphi 0, %s104
      %s108 = sphi 0, %s107
      %s124 = sphi 0, %s108
      %s130 = sphi 0, %s132
      %s133 = sphi 0, %s130
      %s134 = sphi 0, %s133
      %s150 = sphi 0, %s134
    $region4: #{tpu_custom_call.1} parent=1 // loop_header_branch
      %24 = sbr.rel (%p22) target = $region8
    $region5: #{tpu_custom_call.1} parent=1 // loop_body
      %s26 = ssub.s32 %s21, 1
      %s27 = ssub.s32 %s21, 2
      %s28 = sadd.s32 %s21, 1
      %s29 = ssub.s32 %s21, %s28
      %p30 = scmp.eq.s32.totalorder %s29, 0
      %s32 = sadd.s32 %s31, 1
      %s33 = scalar_select %p30, %s31, %s32
      %p36 = pneg %p30
      %p37 = scmp.eq.s32.totalorder %s21, 1
      %p38 = por %p36, %p37
      %p39 = scmp.ne.s32.totalorder %s31, %s34
      %p40 = scmp.eq.s32.totalorder %s21, 0
      %p41 = por %p39, %p40
      %p42 = scmp.ne.s32.totalorder %s31, %s34
      %p43 = scmp.eq.s32.totalorder %s26, 1
      %p44 = por %p42, %p43
      %p45 = scmp.ne.s32.totalorder %s34, %s35
      %p46 = scmp.eq.s32.totalorder %s26, 0
      %p47 = por %p45, %p46
      %p48 = scmp.ne.s32.totalorder %s34, %s35
      %p49 = scmp.eq.s32.totalorder %s27, 1
      %p50 = por %p48, %p49
      %p52 = scmp.ne.s32.totalorder %s35, %s51
      %p53 = scmp.eq.s32.totalorder %s27, 0
      %p54 = por %p52, %p53
      %s56 = sadd.s32 %s55, 1
      %p59 = scmp.eq.s32.totalorder %s21, 1
      %p60 = scmp.ne.s32.totalorder %s55, %s57
      %p61 = scmp.eq.s32.totalorder %s21, 0
      %p62 = por %p60, %p61
      %p63 = scmp.ne.s32.totalorder %s55, %s57
      %p64 = scmp.eq.s32.totalorder %s26, 1
      %p65 = por %p63, %p64
      %p66 = scmp.ne.s32.totalorder %s57, %s58
      %p67 = scmp.eq.s32.totalorder %s26, 0
      %p68 = por %p66, %p67
      %p69 = scmp.ne.s32.totalorder %s57, %s58
      %p70 = scmp.eq.s32.totalorder %s27, 1
      %p71 = por %p69, %p70
      %p73 = scmp.ne.s32.totalorder %s58, %s72
      %p74 = scmp.eq.s32.totalorder %s27, 0
      %p75 = por %p73, %p74
      %s76 = ssub.s32 %s21, %s28
      %p77 = scmp.eq.s32.totalorder %s76, 0
      %s79 = sadd.s32 %s78, 1
      %s80 = scalar_select %p77, %s78, %s79
      %p83 = pneg %p77
      %p84 = scmp.eq.s32.totalorder %s21, 1
      %p85 = por %p83, %p84
      %p86 = scmp.ne.s32.totalorder %s78, %s81
      %p87 = scmp.eq.s32.totalorder %s21, 0
      %p88 = por %p86, %p87
      %p89 = scmp.ne.s32.totalorder %s78, %s81
      %p90 = scmp.eq.s32.totalorder %s26, 1
      %p91 = por %p89, %p90
      %p92 = scmp.ne.s32.totalorder %s81, %s82
      %p93 = scmp.eq.s32.totalorder %s26, 0
      %p94 = por %p92, %p93
      %p95 = scmp.ne.s32.totalorder %s81, %s82
      %p96 = scmp.eq.s32.totalorder %s27, 1
      %p97 = por %p95, %p96
      %p99 = scmp.ne.s32.totalorder %s82, %s98
      %p100 = scmp.eq.s32.totalorder %s27, 0
      %p101 = por %p99, %p100
      %s102 = ssub.s32 %s21, %s28
      %p103 = scmp.eq.s32.totalorder %s102, 0
      %s105 = sadd.s32 %s104, 1
      %s106 = scalar_select %p103, %s104, %s105
      %p109 = pneg %p103
      %p110 = scmp.eq.s32.totalorder %s21, 1
      %p111 = por %p109, %p110
      %p112 = scmp.ne.s32.totalorder %s104, %s107
      %p113 = scmp.eq.s32.totalorder %s21, 0
      %p114 = por %p112, %p113
      %p115 = scmp.ne.s32.totalorder %s104, %s107
      %p116 = scmp.eq.s32.totalorder %s26, 1
      %p117 = por %p115, %p116
      %p118 = scmp.ne.s32.totalorder %s107, %s108
      %p119 = scmp.eq.s32.totalorder %s26, 0
      %p120 = por %p118, %p119
      %p121 = scmp.ne.s32.totalorder %s107, %s108
      %p122 = scmp.eq.s32.totalorder %s27, 1
      %p123 = por %p121, %p122
      %p125 = scmp.ne.s32.totalorder %s108, %s124
      %p126 = scmp.eq.s32.totalorder %s27, 0
      %p127 = por %p125, %p126
      %s128 = ssub.s32 %s21, %s28
      %p129 = scmp.eq.s32.totalorder %s128, 0
      %s131 = sadd.s32 %s130, 1
      %s132 = scalar_select %p129, %s130, %s131
      %p135 = pneg %p129
      %p136 = scmp.eq.s32.totalorder %s21, 1
      %p137 = por %p135, %p136
      %p138 = scmp.ne.s32.totalorder %s130, %s133
      %p139 = scmp.eq.s32.totalorder %s21, 0
      %p140 = por %p138, %p139
      %p141 = scmp.ne.s32.totalorder %s130, %s133
      %p142 = scmp.eq.s32.totalorder %s26, 1
      %p143 = por %p141, %p142
      %p144 = scmp.ne.s32.totalorder %s133, %s134
      %p145 = scmp.eq.s32.totalorder %s26, 0
      %p146 = por %p144, %p145
      %p147 = scmp.ne.s32.totalorder %s133, %s134
      %p148 = scmp.eq.s32.totalorder %s27, 1
      %p149 = por %p147, %p148
      %p151 = scmp.ne.s32.totalorder %s134, %s150
      %p152 = scmp.eq.s32.totalorder %s27, 0
      %p153 = por %p151, %p152
      %p154 = scmp.le.s32.totalorder 1, %s21
      %p155 = scmp.lt.s32.totalorder %s21, 3
      %p156 = pnand %p154, %p155
      %p157 = pneg %p156
      // Predicated region
      $region9: #{tpu_custom_call.1} parent=5 // pred_check
        _
      $region10: #{tpu_custom_call.1} parent=5 // pred_check_branch
        %159 = sbr.rel (%p156) target = $region12
      $region11: #{tpu_custom_call.1} parent=5 // pred_region
        %s160 = ssub.s32 %s21, 1
        // Predicated region
        $region13: #{tpu_custom_call.1} parent=11 // pred_check
          %p161 = pneg %p68
        $region14: #{tpu_custom_call.1} parent=11 // pred_check_branch
          %163 = sbr.rel (%p161) target = $region16
        $region15: #{tpu_custom_call.1} parent=11 // pred_region
          %s165 = ssub.s32 3072, 3072
          %166 = vsyncadd [#allocation6], %s165
          %s167 = sshll.u32 [#allocation5], 4
          %s168 = int_to_ptr.vmem [resolvable:$true] %s167
          %173 = dma.hbm_to_vmem [thread:$0]  %s1, 3072, %s168, [#allocation6], 192, 192, 12
        $region16: #{tpu_custom_call.1} parent=11 // pred_fallthru
          _
      $region12: #{tpu_custom_call.1} parent=5 // pred_fallthru
        _
      %p174 = scmp.lt.s32.totalorder %s21, 2
      // Predicated region
      $region17: #{tpu_custom_call.1} parent=5 // pred_check
        %p175 = pneg %p174
      $region18: #{tpu_custom_call.1} parent=5 // pred_check_branch
        %177 = sbr.rel (%p175) target = $region20
      $region19: #{tpu_custom_call.1} parent=5 // pred_region
        // Predicated region
        $region21: #{tpu_custom_call.1} parent=19 // pred_check
          %p178 = pneg %p41
        $region22: #{tpu_custom_call.1} parent=19 // pred_check_branch
          %180 = sbr.rel (%p178) target = $region24
        $region23: #{tpu_custom_call.1} parent=19 // pred_region
          %s181 = sand.u32 %s31, 1
          %s182 = scalar_lea.sflag [#allocation3], %s181
          %s183 = sand.u32 %s31, 1
          %s184 = smul.addr %s183, 64
          %s185 = scalar_lea.vmem [#allocation2], %s184
          %s186 = smul.u32 16, %s21
          %s188 = ssub.s32 1024, 1024
          %189 = vsyncadd %s182, %s188
          %s190 = smul.addr %s186, 64
          %s191 = scalar_lea.hbm %s0, %s190
          %s192 = sshll.u32 %s185, 4
          %s193 = int_to_ptr.vmem [resolvable:$true] %s192
          %198 = dma.hbm_to_vmem [thread:$0]  %s191, 1024, %s193, %s182, 64, 64, 4
        $region24: #{tpu_custom_call.1} parent=19 // pred_fallthru
          _
      $region20: #{tpu_custom_call.1} parent=5 // pred_fallthru
        _
      %p199 = scmp.le.s32.totalorder 1, %s21
      %p200 = scmp.lt.s32.totalorder %s21, 3
      %p201 = pnand %p199, %p200
      %p202 = pneg %p201
      // Predicated region
      $region25: #{tpu_custom_call.1} parent=5 // pred_check
        _
      $region26: #{tpu_custom_call.1} parent=5 // pred_check_branch
        %204 = sbr.rel (%p201) target = $region28
      $region27: #{tpu_custom_call.1} parent=5 // pred_region
        %s205 = ssub.s32 %s21, 1
        %s206 = sand.u32 %s34, 1
        %s207 = scalar_lea.sflag [#allocation3], %s206
        %s208 = sand.u32 %s34, 1
        %s209 = smul.addr %s208, 64
        %s210 = scalar_lea.vmem [#allocation2], %s209
        // Predicated region
        $region29: #{tpu_custom_call.1} parent=27 // pred_check
          %p211 = pneg %p47
        $region30: #{tpu_custom_call.1} parent=27 // pred_check_branch
          %213 = sbr.rel (%p211) target = $region32
        $region31: #{tpu_custom_call.1} parent=27 // pred_region
          %214 = dma.done %s207, 1024
        $region32: #{tpu_custom_call.1} parent=27 // pred_fallthru
          _
        // Predicated region
        $region33: #{tpu_custom_call.1} parent=27 // pred_check
          %p215 = pneg %p68
        $region34: #{tpu_custom_call.1} parent=27 // pred_check_branch
          %217 = sbr.rel (%p215) target = $region36
        $region35: #{tpu_custom_call.1} parent=27 // pred_region
          %218 = dma.done [#allocation6], 3072
        $region36: #{tpu_custom_call.1} parent=27 // pred_fallthru
          _
        %s219 = sand.u32 %s34, 1
        %s220 = scalar_lea.sflag [#allocation3], %s219
        %s221 = sand.u32 %s34, 1
        %s222 = smul.addr %s221, 64
        %s223 = scalar_lea.vmem [#allocation2], %s222
        %p224 = pneg %p47
        %p225 = pneg %p44
        %p226 = pneg %p68
        %p227 = pneg %p65
        %p228 = pneg %p94
        %p229 = pneg %p91
        %s230 = sand.u32 %s81, 1
        %s231 = scalar_lea.sflag [#allocation4], %s230
        %s232 = sand.u32 %s81, 1
        %s233 = smul.addr %s232, 64
        %s234 = scalar_lea.vmem [#allocation7], %s233
        %p235 = pneg %p120
        %p236 = pneg %p117
        %s237 = sand.u32 %s26, 1
        %s238 = scalar_lea.sflag [#allocation9], %s237
        %s239 = sand.u32 %s107, 1
        %s240 = smul.addr %s239, 64
        %s241 = scalar_lea.vmem [#allocation8], %s240
        %p242 = pneg %p146
        %p243 = pneg %p143
        %s244 = sand.u32 %s26, 1
        %s245 = scalar_lea.sflag [#allocation9], %s244
        %s246 = sand.u32 %s133, 1
        %s247 = smul.addr %s246, 64
        %s248 = scalar_lea.vmem [#allocation10], %s247
        %s249 = smul.u32 16, %s26
        %s250 = smul.u32 16, %s26
        %s251 = smul.u32 16, %s26
        %s252 = smul.u32 16, %s26
        %v254 = vld [vmem:[%s210] sm:$0xf]
        %v255 = vld [vmem:[%s210 + $0x4] sm:$0xf]
        %v256 = vld [vmem:[%s210 + $0x8] sm:$0xf]
        %v257 = vld [vmem:[%s210 + $0xc] sm:$0xf]
        %v258 = vld [vmem:[%s210 + $0x10] sm:$0xf]
        %v259 = vld [vmem:[%s210 + $0x14] sm:$0xf]
        %v260 = vld [vmem:[%s210 + $0x18] sm:$0xf]
        %v261 = vld [vmem:[%s210 + $0x1c] sm:$0xf]
        %v262 = vld [vmem:[%s210 + $0x20] sm:$0xf]
        %v263 = vld [vmem:[%s210 + $0x24] sm:$0xf]
        %v264 = vld [vmem:[%s210 + $0x28] sm:$0xf]
        %v265 = vld [vmem:[%s210 + $0x2c] sm:$0xf]
        %v266 = vld [vmem:[%s210 + $0x30] sm:$0xf]
        %v267 = vld [vmem:[%s210 + $0x34] sm:$0xf]
        %v268 = vld [vmem:[%s210 + $0x38] sm:$0xf]
        %v269 = vld [vmem:[%s210 + $0x3c] sm:$0xf]
        %v270 = vld [vmem:[#allocation5] sm:$0xff]
        %v271 = vld [vmem:[#allocation5 + $0x8] sm:$0xf]
        %v272 = vld [vmem:[#allocation5 + $0xc] sm:$0xff]
        %v273 = vld [vmem:[#allocation5 + $0x14] sm:$0xf]
        %v274 = vld [vmem:[#allocation5 + $0x18] sm:$0xff]
        %v275 = vld [vmem:[#allocation5 + $0x20] sm:$0xf]
        %v276 = vld [vmem:[#allocation5 + $0x24] sm:$0xff]
        %v277 = vld [vmem:[#allocation5 + $0x2c] sm:$0xf]
        %v278 = vld [vmem:[#allocation5 + $0x30] sm:$0xff]
        %v279 = vld [vmem:[#allocation5 + $0x38] sm:$0xf]
        %v280 = vld [vmem:[#allocation5 + $0x3c] sm:$0xff]
        %v281 = vld [vmem:[#allocation5 + $0x44] sm:$0xf]
        %v282 = vld [vmem:[#allocation5 + $0x48] sm:$0xff]
        %v283 = vld [vmem:[#allocation5 + $0x50] sm:$0xf]
        %v284 = vld [vmem:[#allocation5 + $0x54] sm:$0xff]
        %v285 = vld [vmem:[#allocation5 + $0x5c] sm:$0xf]
        %v286 = vld [vmem:[#allocation5 + $0x60] sm:$0xff]
        %v287 = vld [vmem:[#allocation5 + $0x68] sm:$0xf]
        %v288 = vld [vmem:[#allocation5 + $0x6c] sm:$0xff]
        %v289 = vld [vmem:[#allocation5 + $0x74] sm:$0xf]
        %v290 = vld [vmem:[#allocation5 + $0x78] sm:$0xff]
        %v291 = vld [vmem:[#allocation5 + $0x80] sm:$0xf]
        %v292 = vld [vmem:[#allocation5 + $0x84] sm:$0xff]
        %v293 = vld [vmem:[#allocation5 + $0x8c] sm:$0xf]
        %v294 = vld [vmem:[#allocation5 + $0x90] sm:$0xff]
        %v295 = vld [vmem:[#allocation5 + $0x98] sm:$0xf]
        %v296 = vld [vmem:[#allocation5 + $0x9c] sm:$0xff]
        %v297 = vld [vmem:[#allocation5 + $0xa4] sm:$0xf]
        %v298 = vld [vmem:[#allocation5 + $0xa8] sm:$0xff]
        %v299 = vld [vmem:[#allocation5 + $0xb0] sm:$0xf]
        %v300 = vld [vmem:[#allocation5 + $0xb4] sm:$0xff]
        %v301 = vld [vmem:[#allocation5 + $0xbc] sm:$0xf]
        %v318 = vunpack.c.l.b16 %v254
        %v319 = vunpack.c.l.b16 %v255
        %v320 = vunpack.c.l.b16 %v256
        %v321 = vunpack.c.l.b16 %v257
        %v322 = vunpack.c.l.b16 %v258
        %v323 = vunpack.c.l.b16 %v259
        %v324 = vunpack.c.l.b16 %v260
        %v325 = vunpack.c.l.b16 %v261
        %v326 = vunpack.c.l.b16 %v262
        %v327 = vunpack.c.l.b16 %v263
        %v328 = vunpack.c.l.b16 %v264
        %v329 = vunpack.c.l.b16 %v265
        %v330 = vunpack.c.l.b16 %v266
        %v331 = vunpack.c.l.b16 %v267
        %v332 = vunpack.c.l.b16 %v268
        %v333 = vunpack.c.l.b16 %v269
        %v334 = vpack.c.b16 %v319, %v318
        %v335 = vpack.c.b16 %v321, %v320
        %v336 = vpack.c.b16 %v323, %v322
        %v337 = vpack.c.b16 %v325, %v324
        %v338 = vpack.c.b16 %v327, %v326
        %v339 = vpack.c.b16 %v329, %v328
        %v340 = vpack.c.b16 %v331, %v330
        %v341 = vpack.c.b16 %v333, %v332
        %v382 = vunpack.c.l.b16 %v270
        %v383 = vunpack.c.h.b16 %v270
        %v384 = vunpack.c.l.b16 %v271
        %v385 = vunpack.c.l.b16 %v272
        %v386 = vunpack.c.h.b16 %v272
        %v387 = vunpack.c.l.b16 %v273
        %v388 = vunpack.c.l.b16 %v274
        %v389 = vunpack.c.h.b16 %v274
        %v390 = vunpack.c.l.b16 %v275
        %v391 = vunpack.c.l.b16 %v276
        %v392 = vunpack.c.h.b16 %v276
        %v393 = vunpack.c.l.b16 %v277
        %v394 = vunpack.c.l.b16 %v278
        %v395 = vunpack.c.h.b16 %v278
        %v396 = vunpack.c.l.b16 %v279
        %v397 = vunpack.c.l.b16 %v280
        %v398 = vunpack.c.h.b16 %v280
        %v399 = vunpack.c.l.b16 %v281
        %v400 = vunpack.c.l.b16 %v282
        %v401 = vunpack.c.h.b16 %v282
        %v402 = vunpack.c.l.b16 %v283
        %v403 = vunpack.c.l.b16 %v284
        %v404 = vunpack.c.h.b16 %v284
        %v405 = vunpack.c.l.b16 %v285
        %v406 = vunpack.c.l.b16 %v286
        %v407 = vunpack.c.h.b16 %v286
        %v408 = vunpack.c.l.b16 %v287
        %v409 = vunpack.c.l.b16 %v288
        %v410 = vunpack.c.h.b16 %v288
        %v411 = vunpack.c.l.b16 %v289
        %v412 = vunpack.c.l.b16 %v290
        %v413 = vunpack.c.h.b16 %v290
        %v414 = vunpack.c.l.b16 %v291
        %v415 = vunpack.c.l.b16 %v292
        %v416 = vunpack.c.h.b16 %v292
        %v417 = vunpack.c.l.b16 %v293
        %v418 = vunpack.c.l.b16 %v294
        %v419 = vunpack.c.h.b16 %v294
        %v420 = vunpack.c.l.b16 %v295
        %v421 = vunpack.c.l.b16 %v296
        %v422 = vunpack.c.h.b16 %v296
        %v423 = vunpack.c.l.b16 %v297
        %v424 = vunpack.c.l.b16 %v298
        %v425 = vunpack.c.h.b16 %v298
        %v426 = vunpack.c.l.b16 %v299
        %v427 = vunpack.c.l.b16 %v300
        %v428 = vunpack.c.h.b16 %v300
        %v429 = vunpack.c.l.b16 %v301
        %v430 = vpack.c.b16 %v385, %v382
        %v431 = vpack.c.b16 %v386, %v383
        %v432 = vpack.c.b16 %v387, %v384
        %v433 = vpack.c.b16 %v391, %v388
        %v434 = vpack.c.b16 %v392, %v389
        %v435 = vpack.c.b16 %v393, %v390
        %v436 = vpack.c.b16 %v397, %v394
        %v437 = vpack.c.b16 %v398, %v395
        %v438 = vpack.c.b16 %v399, %v396
        %v439 = vpack.c.b16 %v403, %v400
        %v440 = vpack.c.b16 %v404, %v401
        %v441 = vpack.c.b16 %v405, %v402
        %v442 = vpack.c.b16 %v409, %v406
        %v443 = vpack.c.b16 %v410, %v407
        %v444 = vpack.c.b16 %v411, %v408
        %v445 = vpack.c.b16 %v415, %v412
        %v446 = vpack.c.b16 %v416, %v413
        %v447 = vpack.c.b16 %v417, %v414
        %v448 = vpack.c.b16 %v421, %v418
        %v449 = vpack.c.b16 %v422, %v419
        %v450 = vpack.c.b16 %v423, %v420
        %v451 = vpack.c.b16 %v427, %v424
        %v452 = vpack.c.b16 %v428, %v425
        %v453 = vpack.c.b16 %v429, %v426
        %478 = vmatprep.subr.bf16.mxu0 %v431
        %479 = vmatpush1.bf16.msra.mxu0 %v430
        %480 = vmatprep.subr.bf16.mxu0 %v434
        %481 = vmatpush1.bf16.msra.mxu0 %v433
        %482 = vmatprep.subr.bf16.mxu0 %v437
        %483 = vmatpush1.bf16.msra.mxu0 %v436
        %484 = vmatprep.subr.bf16.mxu0 %v440
        %485 = vmatpush1.bf16.msra.mxu0 %v439
        %486 = vmatprep.subr.bf16.mxu0 %v443
        %487 = vmatpush1.bf16.msra.mxu0 %v442
        %488 = vmatprep.subr.bf16.mxu0 %v446
        %489 = vmatpush1.bf16.msra.mxu0 %v445
        %490 = vmatprep.subr.bf16.mxu0 %v449
        %491 = vmatpush1.bf16.msra.mxu0 %v448
        %492 = vmatprep.subr.bf16.mxu0 %v452
        %493 = vmatpush1.bf16.msra.mxu0 %v451
        %494 = vmatprep.subr.bf16.mxu0 0
        %495 = vmatpush1.bf16.msra.mxu0 0
        %496 = vmatprep.subr.bf16.mxu0 0
        %497 = vmatpush1.bf16.msra.mxu0 0
        %498 = vmatprep.subr.bf16.mxu0 0
        %499 = vmatpush1.bf16.msra.mxu0 0
        %500 = vmatprep.subr.bf16.mxu0 0
        %501 = vmatpush1.bf16.msra.mxu0 0
        %502 = vmatprep.subr.bf16.mxu0 0
        %503 = vmatpush1.bf16.msra.mxu0 0
        %504 = vmatprep.subr.bf16.mxu0 0
        %505 = vmatpush1.bf16.msra.mxu0 0
        %506 = vmatprep.subr.bf16.mxu0 0
        %507 = vmatpush1.bf16.msra.mxu0 0
        %508 = vmatprep.subr.bf16.mxu0 0
        %509 = vmatpush1.bf16.msra.mxu0 0
        %510 = vmatprep.mubr.bf16.mxu0 0
        %511 = vmatmul.mubr.bf16.gmra.mrb[0].mxu0 %v334
        %v512 = vpop.f32.mrb[0].mxu0
        %v513 = vadd.f32 0.0, %v512
        %v514 = vpop.f32.mrb[0].mxu0
        %v515 = vadd.f32 0.0, %v514
        %v516 = vpop.f32.mrb[0].mxu0
        %v517 = vadd.f32 0.0, %v516
        %v518 = vpop.f32.mrb[0].mxu0
        %v519 = vadd.f32 0.0, %v518
        %520 = vmatprep.mubr.bf16.mxu0 0
        %521 = vmatmul.mubr.bf16.gmra.mrb[0].mxu0 %v335
        %v522 = vpop.f32.mrb[0].mxu0
        %v523 = vadd.f32 0.0, %v522
        %v524 = vpop.f32.mrb[0].mxu0
        %v525 = vadd.f32 0.0, %v524
        %v526 = vpop.f32.mrb[0].mxu0
        %v527 = vadd.f32 0.0, %v526
        %v528 = vpop.f32.mrb[0].mxu0
        %v529 = vadd.f32 0.0, %v528
        %530 = vmatprep.mubr.bf16.mxu0 0
        %531 = vmatmul.mubr.bf16.gmra.mrb[0].mxu0 %v336
        %v532 = vpop.f32.mrb[0].mxu0
        %v533 = vadd.f32 0.0, %v532
        %v534 = vpop.f32.mrb[0].mxu0
        %v535 = vadd.f32 0.0, %v534
        %v536 = vpop.f32.mrb[0].mxu0
        %v537 = vadd.f32 0.0, %v536
        %v538 = vpop.f32.mrb[0].mxu0
        %v539 = vadd.f32 0.0, %v538
        %540 = vmatprep.mubr.bf16.mxu0 0
        %541 = vmatmul.mubr.bf16.gmra.mrb[0].mxu0 %v337
        %v542 = vpop.f32.mrb[0].mxu0
        %v543 = vadd.f32 0.0, %v542
        %v544 = vpop.f32.mrb[0].mxu0
        %v545 = vadd.f32 0.0, %v544
        %v546 = vpop.f32.mrb[0].mxu0
        %v547 = vadd.f32 0.0, %v546
        %v548 = vpop.f32.mrb[0].mxu0
        %v549 = vadd.f32 0.0, %v548
        %550 = vmatprep.mubr.bf16.mxu0 0
        %551 = vmatmul.mubr.bf16.gmra.mrb[0].mxu0 %v338
        %v552 = vpop.f32.mrb[0].mxu0
        %v553 = vadd.f32 0.0, %v552
        %v554 = vpop.f32.mrb[0].mxu0
        %v555 = vadd.f32 0.0, %v554
        %v556 = vpop.f32.mrb[0].mxu0
        %v557 = vadd.f32 0.0, %v556
        %v558 = vpop.f32.mrb[0].mxu0
        %v559 = vadd.f32 0.0, %v558
        %560 = vmatprep.mubr.bf16.mxu0 0
        %561 = vmatmul.mubr.bf16.gmra.mrb[0].mxu0 %v339
        %v562 = vpop.f32.mrb[0].mxu0
        %v563 = vadd.f32 0.0, %v562
        %v564 = vpop.f32.mrb[0].mxu0
        %v565 = vadd.f32 0.0, %v564
        %v566 = vpop.f32.mrb[0].mxu0
        %v567 = vadd.f32 0.0, %v566
        %v568 = vpop.f32.mrb[0].mxu0
        %v569 = vadd.f32 0.0, %v568
        %570 = vmatprep.mubr.bf16.mxu0 0
        %571 = vmatmul.mubr.bf16.gmra.mrb[0].mxu0 %v340
        %v572 = vpop.f32.mrb[0].mxu0
        %v573 = vadd.f32 0.0, %v572
        %v574 = vpop.f32.mrb[0].mxu0
        %v575 = vadd.f32 0.0, %v574
        %v576 = vpop.f32.mrb[0].mxu0
        %v577 = vadd.f32 0.0, %v576
        %v578 = vpop.f32.mrb[0].mxu0
        %v579 = vadd.f32 0.0, %v578
        %580 = vmatprep.mubr.bf16.mxu0 0
        %581 = vmatmul.mubr.bf16.gmra.mrb[0].mxu0 %v341
        %v582 = vpop.f32.mrb[0].mxu0
        %v583 = vadd.f32 0.0, %v582
        %v584 = vpop.f32.mrb[0].mxu0
        %v585 = vadd.f32 0.0, %v584
        %v586 = vpop.f32.mrb[0].mxu0
        %v587 = vadd.f32 0.0, %v586
        %v588 = vpop.f32.mrb[0].mxu0
        %v589 = vadd.f32 0.0, %v588
        %590 = vdwg.mxu0
        %591 = vmatprep.subr.bf16.mxu0 0
        %592 = vmatpush1.bf16.msra.mxu0 %v432
        %593 = vmatprep.subr.bf16.mxu0 0
        %594 = vmatpush1.bf16.msra.mxu0 %v435
        %595 = vmatprep.subr.bf16.mxu0 0
        %596 = vmatpush1.bf16.msra.mxu0 %v438
        %597 = vmatprep.subr.bf16.mxu0 0
        %598 = vmatpush1.bf16.msra.mxu0 %v441
        %599 = vmatprep.subr.bf16.mxu0 0
        %600 = vmatpush1.bf16.msra.mxu0 %v444
        %601 = vmatprep.subr.bf16.mxu0 0
        %602 = vmatpush1.bf16.msra.mxu0 %v447
        %603 = vmatprep.subr.bf16.mxu0 0
        %604 = vmatpush1.bf16.msra.mxu0 %v450
        %605 = vmatprep.subr.bf16.mxu0 0
        %606 = vmatpush1.bf16.msra.mxu0 %v453
        %607 = vmatprep.subr.bf16.mxu0 0
        %608 = vmatpush1.bf16.msra.mxu0 0
        %609 = vmatprep.subr.bf16.mxu0 0
        %610 = vmatpush1.bf16.msra.mxu0 0
        %611 = vmatprep.subr.bf16.mxu0 0
        %612 = vmatpush1.bf16.msra.mxu0 0
        %613 = vmatprep.subr.bf16.mxu0 0
        %614 = vmatpush1.bf16.msra.mxu0 0
        %615 = vmatprep.subr.bf16.mxu0 0
        %616 = vmatpush1.bf16.msra.mxu0 0
        %617 = vmatprep.subr.bf16.mxu0 0
        %618 = vmatpush1.bf16.msra.mxu0 0
        %619 = vmatprep.subr.bf16.mxu0 0
        %620 = vmatpush1.bf16.msra.mxu0 0
        %621 = vmatprep.subr.bf16.mxu0 0
        %622 = vmatpush1.bf16.msra.mxu0 0
        %623 = vmatprep.mubr.bf16.mxu0 0
        %624 = vmatmul.mubr.bf16.gmra.mrb[0].mxu0 %v334
        %v625 = vpop.f32.mrb[0].mxu0
        %v626 = vadd.f32 0.0, %v625
        %v627 = vpop.f32.mrb[0].mxu0
        %v628 = vpop.f32.mrb[0].mxu0
        %v629 = vadd.f32 0.0, %v628
        %v630 = vpop.f32.mrb[0].mxu0
        %631 = vmatprep.mubr.bf16.mxu0 0
        %632 = vmatmul.mubr.bf16.gmra.mrb[0].mxu0 %v335
        %v633 = vpop.f32.mrb[0].mxu0
        %v634 = vadd.f32 0.0, %v633
        %v635 = vpop.f32.mrb[0].mxu0
        %v636 = vpop.f32.mrb[0].mxu0
        %v637 = vadd.f32 0.0, %v636
        %v638 = vpop.f32.mrb[0].mxu0
        %639 = vmatprep.mubr.bf16.mxu0 0
        %640 = vmatmul.mubr.bf16.gmra.mrb[0].mxu0 %v336
        %v641 = vpop.f32.mrb[0].mxu0
        %v642 = vadd.f32 0.0, %v641
        %v643 = vpop.f32.mrb[0].mxu0
        %v644 = vpop.f32.mrb[0].mxu0
        %v645 = vadd.f32 0.0, %v644
        %v646 = vpop.f32.mrb[0].mxu0
        %647 = vmatprep.mubr.bf16.mxu0 0
        %648 = vmatmul.mubr.bf16.gmra.mrb[0].mxu0 %v337
        %v649 = vpop.f32.mrb[0].mxu0
        %v650 = vadd.f32 0.0, %v649
        %v651 = vpop.f32.mrb[0].mxu0
        %v652 = vpop.f32.mrb[0].mxu0
        %v653 = vadd.f32 0.0, %v652
        %v654 = vpop.f32.mrb[0].mxu0
        %655 = vmatprep.mubr.bf16.mxu0 0
        %656 = vmatmul.mubr.bf16.gmra.mrb[0].mxu0 %v338
        %v657 = vpop.f32.mrb[0].mxu0
        %v658 = vadd.f32 0.0, %v657
        %v659 = vpop.f32.mrb[0].mxu0
        %v660 = vpop.f32.mrb[0].mxu0
        %v661 = vadd.f32 0.0, %v660
        %v662 = vpop.f32.mrb[0].mxu0
        %663 = vmatprep.mubr.bf16.mxu0 0
        %664 = vmatmul.mubr.bf16.gmra.mrb[0].mxu0 %v339
        %v665 = vpop.f32.mrb[0].mxu0
        %v666 = vadd.f32 0.0, %v665
        %v667 = vpop.f32.mrb[0].mxu0
        %v668 = vpop.f32.mrb[0].mxu0
        %v669 = vadd.f32 0.0, %v668
        %v670 = vpop.f32.mrb[0].mxu0
        %671 = vmatprep.mubr.bf16.mxu0 0
        %672 = vmatmul.mubr.bf16.gmra.mrb[0].mxu0 %v340
        %v673 = vpop.f32.mrb[0].mxu0
        %v674 = vadd.f32 0.0, %v673
        %v675 = vpop.f32.mrb[0].mxu0
        %v676 = vpop.f32.mrb[0].mxu0
        %v677 = vadd.f32 0.0, %v676
        %v678 = vpop.f32.mrb[0].mxu0
        %679 = vmatprep.mubr.bf16.mxu0 0
        %680 = vmatmul.mubr.bf16.gmra.mrb[0].mxu0 %v341
        %v681 = vpop.f32.mrb[0].mxu0
        %v682 = vadd.f32 0.0, %v681
        %v683 = vpop.f32.mrb[0].mxu0
        %v684 = vpop.f32.mrb[0].mxu0
        %v685 = vadd.f32 0.0, %v684
        %v686 = vpop.f32.mrb[0].mxu0
        %687 = vdwg.mxu0
        %v688 = vpack.c.bf16 %v517, %v513
        %v689 = vpack.c.bf16 %v527, %v523
        %v690 = vpack.c.bf16 %v537, %v533
        %v691 = vpack.c.bf16 %v547, %v543
        %v692 = vpack.c.bf16 %v557, %v553
        %v693 = vpack.c.bf16 %v567, %v563
        %v694 = vpack.c.bf16 %v577, %v573
        %v695 = vpack.c.bf16 %v587, %v583
        %v704 = vunpack.c.l.b16 %v688
        %v705 = vunpack.c.h.b16 %v688
        %v706 = vunpack.c.l.b16 %v689
        %v707 = vunpack.c.h.b16 %v689
        %v708 = vunpack.c.l.b16 %v690
        %v709 = vunpack.c.h.b16 %v690
        %v710 = vunpack.c.l.b16 %v691
        %v711 = vunpack.c.h.b16 %v691
        %v712 = vunpack.c.l.b16 %v692
        %v713 = vunpack.c.h.b16 %v692
        %v714 = vunpack.c.l.b16 %v693
        %v715 = vunpack.c.h.b16 %v693
        %v716 = vunpack.c.l.b16 %v694
        %v717 = vunpack.c.h.b16 %v694
        %v718 = vunpack.c.l.b16 %v695
        %v719 = vunpack.c.h.b16 %v695
        %v720 = vpack.c.b16 %v704, %v704
        %v721 = vpack.c.b16 %v705, %v705
        %v722 = vpack.c.b16 %v706, %v706
        %v723 = vpack.c.b16 %v707, %v707
        %v724 = vpack.c.b16 %v708, %v708
        %v725 = vpack.c.b16 %v709, %v709
        %v726 = vpack.c.b16 %v710, %v710
        %v727 = vpack.c.b16 %v711, %v711
        %v728 = vpack.c.b16 %v712, %v712
        %v729 = vpack.c.b16 %v713, %v713
        %v730 = vpack.c.b16 %v714, %v714
        %v731 = vpack.c.b16 %v715, %v715
        %v732 = vpack.c.b16 %v716, %v716
        %v733 = vpack.c.b16 %v717, %v717
        %v734 = vpack.c.b16 %v718, %v718
        %v735 = vpack.c.b16 %v719, %v719
        %752 = vst [vmem:[%s234] sm:$0xf] %v720
        %753 = vst [vmem:[%s234 + $0x4] sm:$0xf] %v721
        %754 = vst [vmem:[%s234 + $0x8] sm:$0xf] %v722
        %755 = vst [vmem:[%s234 + $0xc] sm:$0xf] %v723
        %756 = vst [vmem:[%s234 + $0x10] sm:$0xf] %v724
        %757 = vst [vmem:[%s234 + $0x14] sm:$0xf] %v725
        %758 = vst [vmem:[%s234 + $0x18] sm:$0xf] %v726
        %759 = vst [vmem:[%s234 + $0x1c] sm:$0xf] %v727
        %760 = vst [vmem:[%s234 + $0x20] sm:$0xf] %v728
        %761 = vst [vmem:[%s234 + $0x24] sm:$0xf] %v729
        %762 = vst [vmem:[%s234 + $0x28] sm:$0xf] %v730
        %763 = vst [vmem:[%s234 + $0x2c] sm:$0xf] %v731
        %764 = vst [vmem:[%s234 + $0x30] sm:$0xf] %v732
        %765 = vst [vmem:[%s234 + $0x34] sm:$0xf] %v733
        %766 = vst [vmem:[%s234 + $0x38] sm:$0xf] %v734
        %767 = vst [vmem:[%s234 + $0x3c] sm:$0xf] %v735
        %v768 = vpack.c.bf16 %v519, %v515
        %v769 = vpack.c.bf16 %v529, %v525
        %v770 = vpack.c.bf16 %v539, %v535
        %v771 = vpack.c.bf16 %v549, %v545
        %v772 = vpack.c.bf16 %v559, %v555
        %v773 = vpack.c.bf16 %v569, %v565
        %v774 = vpack.c.bf16 %v579, %v575
        %v775 = vpack.c.bf16 %v589, %v585
        %v784 = vunpack.c.l.b16 %v768
        %v785 = vunpack.c.h.b16 %v768
        %v786 = vunpack.c.l.b16 %v769
        %v787 = vunpack.c.h.b16 %v769
        %v788 = vunpack.c.l.b16 %v770
        %v789 = vunpack.c.h.b16 %v770
        %v790 = vunpack.c.l.b16 %v771
        %v791 = vunpack.c.h.b16 %v771
        %v792 = vunpack.c.l.b16 %v772
        %v793 = vunpack.c.h.b16 %v772
        %v794 = vunpack.c.l.b16 %v773
        %v795 = vunpack.c.h.b16 %v773
        %v796 = vunpack.c.l.b16 %v774
        %v797 = vunpack.c.h.b16 %v774
        %v798 = vunpack.c.l.b16 %v775
        %v799 = vunpack.c.h.b16 %v775
        %v800 = vpack.c.b16 %v784, %v784
        %v801 = vpack.c.b16 %v785, %v785
        %v802 = vpack.c.b16 %v786, %v786
        %v803 = vpack.c.b16 %v787, %v787
        %v804 = vpack.c.b16 %v788, %v788
        %v805 = vpack.c.b16 %v789, %v789
        %v806 = vpack.c.b16 %v790, %v790
        %v807 = vpack.c.b16 %v791, %v791
        %v808 = vpack.c.b16 %v792, %v792
        %v809 = vpack.c.b16 %v793, %v793
        %v810 = vpack.c.b16 %v794, %v794
        %v811 = vpack.c.b16 %v795, %v795
        %v812 = vpack.c.b16 %v796, %v796
        %v813 = vpack.c.b16 %v797, %v797
        %v814 = vpack.c.b16 %v798, %v798
        %v815 = vpack.c.b16 %v799, %v799
        %832 = vst [vmem:[%s241] sm:$0xf] %v800
        %833 = vst [vmem:[%s241 + $0x4] sm:$0xf] %v801
        %834 = vst [vmem:[%s241 + $0x8] sm:$0xf] %v802
        %835 = vst [vmem:[%s241 + $0xc] sm:$0xf] %v803
        %836 = vst [vmem:[%s241 + $0x10] sm:$0xf] %v804
        %837 = vst [vmem:[%s241 + $0x14] sm:$0xf] %v805
        %838 = vst [vmem:[%s241 + $0x18] sm:$0xf] %v806
        %839 = vst [vmem:[%s241 + $0x1c] sm:$0xf] %v807
        %840 = vst [vmem:[%s241 + $0x20] sm:$0xf] %v808
        %841 = vst [vmem:[%s241 + $0x24] sm:$0xf] %v809
        %842 = vst [vmem:[%s241 + $0x28] sm:$0xf] %v810
        %843 = vst [vmem:[%s241 + $0x2c] sm:$0xf] %v811
        %844 = vst [vmem:[%s241 + $0x30] sm:$0xf] %v812
        %845 = vst [vmem:[%s241 + $0x34] sm:$0xf] %v813
        %846 = vst [vmem:[%s241 + $0x38] sm:$0xf] %v814
        %847 = vst [vmem:[%s241 + $0x3c] sm:$0xf] %v815
        %v848 = vpack.c.bf16 %v629, %v626
        %v849 = vpack.c.bf16 %v637, %v634
        %v850 = vpack.c.bf16 %v645, %v642
        %v851 = vpack.c.bf16 %v653, %v650
        %v852 = vpack.c.bf16 %v661, %v658
        %v853 = vpack.c.bf16 %v669, %v666
        %v854 = vpack.c.bf16 %v677, %v674
        %v855 = vpack.c.bf16 %v685, %v682
        %v864 = vunpack.c.l.b16 %v848
        %v865 = vunpack.c.h.b16 %v848
        %v866 = vunpack.c.l.b16 %v849
        %v867 = vunpack.c.h.b16 %v849
        %v868 = vunpack.c.l.b16 %v850
        %v869 = vunpack.c.h.b16 %v850
        %v870 = vunpack.c.l.b16 %v851
        %v871 = vunpack.c.h.b16 %v851
        %v872 = vunpack.c.l.b16 %v852
        %v873 = vunpack.c.h.b16 %v852
        %v874 = vunpack.c.l.b16 %v853
        %v875 = vunpack.c.h.b16 %v853
        %v876 = vunpack.c.l.b16 %v854
        %v877 = vunpack.c.h.b16 %v854
        %v878 = vunpack.c.l.b16 %v855
        %v879 = vunpack.c.h.b16 %v855
        %v880 = vpack.c.b16 %v864, %v864
        %v881 = vpack.c.b16 %v865, %v865
        %v882 = vpack.c.b16 %v866, %v866
        %v883 = vpack.c.b16 %v867, %v867
        %v884 = vpack.c.b16 %v868, %v868
        %v885 = vpack.c.b16 %v869, %v869
        %v886 = vpack.c.b16 %v870, %v870
        %v887 = vpack.c.b16 %v871, %v871
        %v888 = vpack.c.b16 %v872, %v872
        %v889 = vpack.c.b16 %v873, %v873
        %v890 = vpack.c.b16 %v874, %v874
        %v891 = vpack.c.b16 %v875, %v875
        %v892 = vpack.c.b16 %v876, %v876
        %v893 = vpack.c.b16 %v877, %v877
        %v894 = vpack.c.b16 %v878, %v878
        %v895 = vpack.c.b16 %v879, %v879
        %912 = vst [vmem:[%s248] sm:$0xf] %v880
        %913 = vst [vmem:[%s248 + $0x4] sm:$0xf] %v881
        %914 = vst [vmem:[%s248 + $0x8] sm:$0xf] %v882
        %915 = vst [vmem:[%s248 + $0xc] sm:$0xf] %v883
        %916 = vst [vmem:[%s248 + $0x10] sm:$0xf] %v884
        %917 = vst [vmem:[%s248 + $0x14] sm:$0xf] %v885
        %918 = vst [vmem:[%s248 + $0x18] sm:$0xf] %v886
        %919 = vst [vmem:[%s248 + $0x1c] sm:$0xf] %v887
        %920 = vst [vmem:[%s248 + $0x20] sm:$0xf] %v888
        %921 = vst [vmem:[%s248 + $0x24] sm:$0xf] %v889
        %922 = vst [vmem:[%s248 + $0x28] sm:$0xf] %v890
        %923 = vst [vmem:[%s248 + $0x2c] sm:$0xf] %v891
        %924 = vst [vmem:[%s248 + $0x30] sm:$0xf] %v892
        %925 = vst [vmem:[%s248 + $0x34] sm:$0xf] %v893
        %926 = vst [vmem:[%s248 + $0x38] sm:$0xf] %v894
        %927 = vst [vmem:[%s248 + $0x3c] sm:$0xf] %v895
        %s928 = sand.u32 %s81, 1
        %s929 = scalar_lea.sflag [#allocation4], %s928
        %s930 = sand.u32 %s81, 1
        %s931 = smul.addr %s930, 64
        %s932 = scalar_lea.vmem [#allocation7], %s931
        %s933 = sand.u32 %s26, 1
        %s934 = scalar_lea.sflag [#allocation9], %s933
        %s935 = sand.u32 %s107, 1
        %s936 = smul.addr %s935, 64
        %s937 = scalar_lea.vmem [#allocation8], %s936
        %s938 = sand.u32 %s26, 1
        %s939 = scalar_lea.sflag [#allocation9], %s938
        %s940 = sand.u32 %s133, 1
        %s941 = smul.addr %s940, 64
        %s942 = scalar_lea.vmem [#allocation10], %s941
        // Predicated region
        $region37: #{tpu_custom_call.1} parent=27 // pred_check
          %p943 = pneg %p91
        $region38: #{tpu_custom_call.1} parent=27 // pred_check_branch
          %945 = sbr.rel (%p943) target = $region40
        $region39: #{tpu_custom_call.1} parent=27 // pred_region
          %s946 = smul.u32 16, %s26
          %s948 = ssub.s32 1024, 1024
          %949 = vsyncadd %s929, %s948
          %s950 = smul.addr %s946, 64
          %s951 = scalar_lea.hbm %s2, %s950
          %s952 = sshll.u32 %s932, 4
          %s953 = int_to_ptr.vmem [resolvable:$true] %s952
          %958 = dma.vmem_to_hbm [thread:$0]  %s953, 1024, %s951, %s929, 64, 64, 4
        $region40: #{tpu_custom_call.1} parent=27 // pred_fallthru
          _
        // Predicated region
        $region41: #{tpu_custom_call.1} parent=27 // pred_check
          %p959 = pneg %p117
        $region42: #{tpu_custom_call.1} parent=27 // pred_check_branch
          %961 = sbr.rel (%p959) target = $region44
        $region43: #{tpu_custom_call.1} parent=27 // pred_region
          %s962 = smul.u32 16, %s26
          %s964 = ssub.s32 1024, 1024
          %965 = vsyncadd %s934, %s964
          %s966 = smul.addr %s962, 64
          %s967 = scalar_lea.hbm %s3, %s966
          %s968 = sshll.u32 %s937, 4
          %s969 = int_to_ptr.vmem [resolvable:$true] %s968
          %974 = dma.vmem_to_hbm [thread:$0]  %s969, 1024, %s967, %s934, 64, 64, 4
        $region44: #{tpu_custom_call.1} parent=27 // pred_fallthru
          _
        // Predicated region
        $region45: #{tpu_custom_call.1} parent=27 // pred_check
          %p975 = pneg %p143
        $region46: #{tpu_custom_call.1} parent=27 // pred_check_branch
          %977 = sbr.rel (%p975) target = $region48
        $region47: #{tpu_custom_call.1} parent=27 // pred_region
          %s978 = smul.u32 16, %s26
          %s980 = ssub.s32 1024, 1024
          %981 = vsyncadd %s939, %s980
          %s982 = smul.addr %s978, 64
          %s983 = scalar_lea.hbm %s4, %s982
          %s984 = sshll.u32 %s942, 4
          %s985 = int_to_ptr.vmem [resolvable:$true] %s984
          %990 = dma.vmem_to_hbm [thread:$0]  %s985, 1024, %s983, %s939, 64, 64, 4
        $region48: #{tpu_custom_call.1} parent=27 // pred_fallthru
          _
      $region28: #{tpu_custom_call.1} parent=5 // pred_fallthru
        _
      %p991 = scmp.le.s32.totalorder 2, %s21
      // Predicated region
      $region49: #{tpu_custom_call.1} parent=5 // pred_check
        %p992 = pneg %p991
      $region50: #{tpu_custom_call.1} parent=5 // pred_check_branch
        %994 = sbr.rel (%p992) target = $region52
      $region51: #{tpu_custom_call.1} parent=5 // pred_region
        %s995 = ssub.s32 %s21, 2
        // Predicated region
        $region53: #{tpu_custom_call.1} parent=51 // pred_check
          %p996 = pneg %p97
        $region54: #{tpu_custom_call.1} parent=51 // pred_check_branch
          %998 = sbr.rel (%p996) target = $region56
        $region55: #{tpu_custom_call.1} parent=51 // pred_region
          %s999 = sand.u32 %s82, 1
          %s1000 = scalar_lea.sflag [#allocation4], %s999
          %s1001 = sand.u32 %s82, 1
          %s1002 = smul.addr %s1001, 64
          %s1003 = scalar_lea.vmem [#allocation7], %s1002
          %1004 = dma.done %s1000, 1024
        $region56: #{tpu_custom_call.1} parent=51 // pred_fallthru
          _
        // Predicated region
        $region57: #{tpu_custom_call.1} parent=51 // pred_check
          %p1005 = pneg %p123
        $region58: #{tpu_custom_call.1} parent=51 // pred_check_branch
          %1007 = sbr.rel (%p1005) target = $region60
        $region59: #{tpu_custom_call.1} parent=51 // pred_region
          %s1008 = sand.u32 %s27, 1
          %s1009 = scalar_lea.sflag [#allocation9], %s1008
          %s1010 = sand.u32 %s108, 1
          %s1011 = smul.addr %s1010, 64
          %s1012 = scalar_lea.vmem [#allocation8], %s1011
          %1013 = dma.done %s1009, 1024
        $region60: #{tpu_custom_call.1} parent=51 // pred_fallthru
          _
        // Predicated region
        $region61: #{tpu_custom_call.1} parent=51 // pred_check
          %p1014 = pneg %p149
        $region62: #{tpu_custom_call.1} parent=51 // pred_check_branch
          %1016 = sbr.rel (%p1014) target = $region64
        $region63: #{tpu_custom_call.1} parent=51 // pred_region
          %s1017 = sand.u32 %s27, 1
          %s1018 = scalar_lea.sflag [#allocation9], %s1017
          %s1019 = sand.u32 %s134, 1
          %s1020 = smul.addr %s1019, 64
          %s1021 = scalar_lea.vmem [#allocation10], %s1020
          %1022 = dma.done %s1018, 1024
        $region64: #{tpu_custom_call.1} parent=51 // pred_fallthru
          _
      $region52: #{tpu_custom_call.1} parent=5 // pred_fallthru
        _
    $region6: #{tpu_custom_call.1} parent=1 // loop_footer
      %s25 = sadd.s32 1, %s21
    $region7: #{tpu_custom_call.1} parent=1 // loop_footer_branch
      %20 = sbr.rel target = $region3
    $region8: #{tpu_custom_call.1} parent=1 // loop_exit
      _
    %1023 = vsyncpa [#allocation3], 1
    %s1024 = scalar_lea.sflag [#allocation3], 1
    %1025 = vsyncpa %s1024, 1
    %1026 = vsyncpa [#allocation6], 1
    %1027 = vsyncpa [#allocation4], 1
    %s1028 = scalar_lea.sflag [#allocation4], 1
    %1029 = vsyncpa %s1028, 1
    %1030 = vsyncpa [#allocation9], 1
    %s1031 = scalar_lea.sflag [#allocation9], 1
    %1032 = vsyncpa %s1031, 1

</llo_original>
